<compile_context>
chip_gen: v5e
topology: v5e:2x2
jax: 0.10.0
libtpu: 0.0.40
codegen_flags: <defaults>
</compile_context>

<pallas_src>
import jax
import jax.numpy as jnp
from jax.experimental import pallas as pl
from jax.experimental.pallas import tpu as pltpu


def _round_up(x, m):
    return ((x + m - 1) // m) * m


def log_norm_kernel(x_ref, w_ref, o_ref):
    # In-kernel cast of the x tile: no-op on the f32 path; on the bf16 path it
    # is a VPU cast hidden under the streaming DMA (x stays f32 in HBM).
    x = x_ref[...].astype(w_ref.dtype)
    y = jnp.dot(x, w_ref[...], preferred_element_type=jnp.float32)
    # sigmoid via tanh -> EUP slot, f32 epilogue (safe on v5e too).
    o_ref[...] = (0.5 * (jnp.tanh(0.5 * y) + 1.0)).astype(o_ref.dtype)


def _mask_like_training(w):
    # Training-mode weight masking from the PyTorch module: global mean of
    # |w|, keep entries with |w| >= mean (done wrapper-side in plain JAX).
    a = jnp.abs(w)
    return w * (a >= jnp.mean(a)).astype(w.dtype)


def log_norm_forward(x, w1, w2, *, tm=4096, compute_dtype=None, training=False):
    """Forward pass of log_norm (training=False reproduces the inference path)."""
    out_dtype = x.dtype
    M, K = x.shape
    Kw, H = w1.shape
    Hw, N = w2.shape
    assert K == Kw and H == Hw

    if training:
        w1 = _mask_like_training(w1)
        w2 = _mask_like_training(w2)

    # Fuse the weights: no nonlinearity between the two matmuls, and (K, N) is
    # tiny, so this removes the second MXU pass and all hidden-dim traffic.
    w = jnp.dot(w1, w2, preferred_element_type=jnp.float32)
    w = w.astype(compute_dtype if compute_dtype is not None else x.dtype)

    # Row-only tiling; K and N keep their true widths (full-dim blocks are
    # exempt from the (8,128) rule), so no padded lanes and no post-slice pass.
    sublane = 16 if x.dtype == jnp.bfloat16 else 8
    M_pad = _round_up(M, sublane)
    if M_pad != M:
        x = jnp.pad(x, ((0, M_pad - M), (0, 0)))   # at most sublane-1 rows

    # Tile selection: big tiles amortize per-step pipeline cost, but keep the
    # grid at >= 2 steps where possible so the "parallel" axis can shard rows
    # across both v7x TensorCores. VMEM is not a constraint at these widths
    # (tm=4096, f32: ~0.5 MiB x-tile + 0.25 MiB out-tile, double-buffered).
    half = _round_up(pl.cdiv(M_pad, 2), sublane)
    tm = max(sublane, min(_round_up(tm, sublane), half))
    grid = (pl.cdiv(M_pad, tm),)

    out = pl.pallas_call(
        log_norm_kernel,
        out_shape=jax.ShapeDtypeStruct((M_pad, N), out_dtype),
        grid_spec=pl.GridSpec(
            grid=grid,
            in_specs=[
                pl.BlockSpec((tm, K), lambda i: (i, 0)),   # x tile streams
                pl.BlockSpec((K, N), lambda i: (0, 0)),    # fused W resident
            ],
            out_specs=pl.BlockSpec((tm, N), lambda i: (i, 0)),
        ),
        compiler_params=pltpu.CompilerParams(
            # Independent row tiles: megacore-shardable on v7x.
            dimension_semantics=("parallel",),
        ),
    )(x, w)

    return out[:M] if M_pad != M else out


if __name__ == "__main__":
    # Small shapes consistent with the module: hidden = 5 * input_dim.
    batch = 8
    input_dim = 32
    output_dim = 16
    hidden = 5 * input_dim  # 160

    key = jax.random.PRNGKey(0)
    k_x, k_w1, k_w2, k_xb = jax.random.split(key, 4)

    x = jax.random.normal(k_x, (batch, input_dim), dtype=jnp.float32)
    w1 = jax.random.normal(k_w1, (input_dim, hidden), dtype=jnp.float32) * 0.1
    w2 = jax.random.normal(k_w2, (hidden, output_dim), dtype=jnp.float32) * 0.1

    ref = jax.nn.sigmoid(x @ w1 @ w2)

    # f32 inference path.
    out = jax.block_until_ready(log_norm_forward(x, w1, w2))
    assert out.shape == (batch, output_dim)
    assert jnp.allclose(out, ref, atol=1e-4, rtol=1e-4)

    # bf16 MXU-input fast path: f32 accumulation, f32 sigmoid.
    out_bf16 = jax.block_until_ready(
        log_norm_forward(x, w1, w2, compute_dtype=jnp.bfloat16))
    assert out_bf16.shape == (batch, output_dim)
    assert jnp.allclose(out_bf16, ref, atol=5e-2, rtol=5e-2)

    # Training path (weight masking) against a plain-JAX reference.
    def _mask(w):
        a = jnp.abs(w)
        return w * (a >= jnp.mean(a)).astype(w.dtype)
    ref_train = jax.nn.sigmoid(x @ _mask(w1) @ _mask(w2))
    out_train = jax.block_until_ready(log_norm_forward(x, w1, w2, training=True))
    assert jnp.allclose(out_train, ref_train, atol=1e-4, rtol=1e-4)

    # Ragged M (not a multiple of 8) exercises sublane padding + multi-step grid
    # with a partial last block.
    x_big = jax.random.normal(k_xb, (100, input_dim), dtype=jnp.float32)
    ref_big = jax.nn.sigmoid(x_big @ w1 @ w2)
    out_big = jax.block_until_ready(log_norm_forward(x_big, w1, w2))
    assert out_big.shape == (100, output_dim)
    assert jnp.allclose(out_big, ref_big, atol=1e-4, rtol=1e-4)

    print("KERNEL_OK")
</pallas_src>

<mosaic_0001>
module attributes {stable_mosaic.version = 11 : i64} {
  func.func @log_norm_kernel(%arg0: i32, %arg1: memref<8x32xf32, #tpu.memory_space<vmem>>, %arg2: memref<32x16xf32, #tpu.memory_space<vmem>>, %arg3: memref<8x16xf32, #tpu.memory_space<vmem>>) attributes {dimension_semantics = [#tpu.dimension_semantics<parallel>], iteration_bounds = array<i64: 1>, scalar_prefetch = 0 : i64, scratch_operands = 0 : i64, tpu.core_type = #tpu.core_type<tc>, window_params = [{transform_indices = @transform_0, window_bounds = array<i64: 8, 32>}, {pipeline_mode = #tpu.pipeline_mode<synchronous>, transform_indices = @transform_1, window_bounds = array<i64: 32, 16>}, {transform_indices = @transform_2, window_bounds = array<i64: 8, 16>}]} {
    %c0 = arith.constant 0 : index
    %c0_0 = arith.constant 0 : index
    %0 = vector.load %arg1[%c0, %c0_0] : memref<8x32xf32, #tpu.memory_space<vmem>>, vector<8x32xf32>
    %c0_1 = arith.constant 0 : index
    %c0_2 = arith.constant 0 : index
    %1 = vector.load %arg2[%c0_1, %c0_2] : memref<32x16xf32, #tpu.memory_space<vmem>>, vector<32x16xf32>
    %cst = arith.constant dense<0.000000e+00> : vector<8x16xf32>
    %2 = tpu.matmul %0, %1, %cst {dimension_numbers = #tpu.dot_dimension_numbers<[1], [0], [0], [1], [0, 0, 1, 1], [], []>} : vector<8x32xf32>, vector<32x16xf32>, vector<8x16xf32> -> vector<8x16xf32>
    %cst_3 = arith.constant 5.000000e-01 : f32
    %3 = vector.broadcast %cst_3 : f32 to vector<8x16xf32>
    %4 = arith.mulf %3, %2 : vector<8x16xf32>
    %5 = math.tanh %4 : vector<8x16xf32>
    %cst_4 = arith.constant 1.000000e+00 : f32
    %6 = vector.broadcast %cst_4 : f32 to vector<8x16xf32>
    %7 = arith.addf %5, %6 : vector<8x16xf32>
    %cst_5 = arith.constant 5.000000e-01 : f32
    %8 = vector.broadcast %cst_5 : f32 to vector<8x16xf32>
    %9 = arith.mulf %8, %7 : vector<8x16xf32>
    %c0_6 = arith.constant 0 : index
    %c0_7 = arith.constant 0 : index
    %10 = vector.load %arg3[%c0_6, %c0_7] : memref<8x16xf32, #tpu.memory_space<vmem>>, vector<8x16xf32>
    tpu.vector_store %arg3[%c0_6, %c0_7], %9 {strides = array<i32>} : memref<8x16xf32, #tpu.memory_space<vmem>>, vector<8x16xf32>,
    return
  }
  func.func @transform_0(%arg0: i32) -> (i32, i32) {
    %c0_i32 = arith.constant 0 : i32
    %c0_i32_0 = arith.constant 0 : i32
    return %arg0, %c0_i32 : i32, i32
  }
  func.func @transform_1(%arg0: i32) -> (i32, i32) {
    %c0_i32 = arith.constant 0 : i32
    %c0_i32_0 = arith.constant 0 : i32
    %c0_i32_1 = arith.constant 0 : i32
    return %c0_i32, %c0_i32_0 : i32, i32
  }
  func.func @transform_2(%arg0: i32) -> (i32, i32) {
    %c0_i32 = arith.constant 0 : i32
    %c0_i32_0 = arith.constant 0 : i32
    return %arg0, %c0_i32 : i32, i32
  }
}

</mosaic_0001>

<llo_original>
// kernel: tpu_custom_call.1
$region0: #{tpu_custom_call.1}
  #allocation0 [shape = 'u32[]', space=smem, size = 0x4, offset = 0x4, fixed_abs, tag = 'smem constant byte address 0x4 - core index']
  #allocation1 [shape = 'u32[72,128]{1,0:T(1,128)}', space=vmem, size = 0x9000, scoped, tag = 'internal scratch']
  %s0 = inlined_call_operand.vmem [shape: f32[8,32], index: 0, kind: input, shape index: {}]
  %s1 = inlined_call_operand.vmem [shape: f32[32,16], index: 1, kind: input, shape index: {}]
  %s2 = inlined_call_operand.hbm [shape: f32[8,16], index: 2, kind: output, shape index: {}]
  %s3 = sld [smem:[#allocation0]]
  $region18: #{tpu_custom_call.1} parent=0
    _
  %s5 = ssub.s32 1, %s3
  %s6 = scalar_select 0, %s5, %s3
  $region1: #{tpu_custom_call.1} parent=0
    #allocation2 [shape = 'u8[4096]{0}', space=vmem, size = 0x1000, scoped, tag = 'output window, operand 0, single buffered']
    #allocation3 [shape = 's32[1]{0}', space=sflag, size = 0x4, scoped, tag = 'scoped memory for tpu_custom_call.1']
    %7 = vsyncpa [#allocation3], 0
    // Predicated region
    $region2: #{tpu_custom_call.1} parent=1 // pred_check
      _
    $region3: #{tpu_custom_call.1} parent=1 // pred_check_branch
      %9 = sbr.rel (0) target = $region5
    $region4: #{tpu_custom_call.1} parent=1 // pred_region
      _
    $region5: #{tpu_custom_call.1} parent=1 // pred_fallthru
      _
    // Predicated region
    $region6: #{tpu_custom_call.1} parent=1 // pred_check
      _
    $region7: #{tpu_custom_call.1} parent=1 // pred_check_branch
      %11 = sbr.rel (0) target = $region9
    $region8: #{tpu_custom_call.1} parent=1 // pred_region
      _
    $region9: #{tpu_custom_call.1} parent=1 // pred_fallthru
      _
    %v12 = vld [vmem:[%s0] sm:$0xff]
    %v13 = vld [vmem:[%s1] sm:$0xff]
    %v14 = vld [vmem:[%s1 + $0x8] sm:$0xff]
    %v15 = vld [vmem:[%s1 + $0x10] sm:$0xff]
    %v16 = vld [vmem:[%s1 + $0x18] sm:$0xff]
    %vm17 = vcmask 261120
    %v19 = vsel %vm17, %v12, 0
    %21 = vmatpush.msra.mxu0 0.0
    %22 = vmatpush.msra.mxu0 0.0
    %23 = vmatpush.msra.mxu0 0.0
    %24 = vmatpush.msra.mxu0 0.0
    %25 = vmatpush.msra.mxu0 0.0
    %26 = vmatpush.msra.mxu0 0.0
    %27 = vmatpush.msra.mxu0 0.0
    %28 = vmatpush.msra.mxu0 0.0
    %29 = vmatpush.msra.mxu0 0.0
    %30 = vmatpush.msra.mxu0 0.0
    %31 = vmatpush.msra.mxu0 0.0
    %32 = vmatpush.msra.mxu0 0.0
    %33 = vmatpush.msra.mxu0 %v16
    %34 = vmatpush.msra.mxu0 %v15
    %35 = vmatpush.msra.mxu0 %v14
    %36 = vmatpush.msra.mxu0 %v13
    %37 = vmatmul.f32.gmra.mxu0 %v19
    %v38 = vpop.f32.mrf.mxu0
    %v39 = vadd.f32 0.0, %v38
    %40 = vdwg.mxu0
    %v41 = vmul.f32 %v39, 0.5
    %v42 = vtanh.pop %v41
    %v43 = vadd.f32 %v42, 1.0
    %v44 = vmul.f32 %v43, 0.5
    %vm45 = vcmask 130048
    %46 = vst.msk [vmem:[#allocation2] sm:$0xff] %vm45, %v44
    // Predicated region
    $region10: #{tpu_custom_call.1} parent=1 // pred_check
      _
    $region11: #{tpu_custom_call.1} parent=1 // pred_check_branch
      %48 = sbr.rel (0) target = $region13
    $region12: #{tpu_custom_call.1} parent=1 // pred_region
      %50 = vsyncadd [#allocation3], 0
      %s52 = sshll.u32 [#allocation2], 4
      %s53 = int_to_ptr.vmem [resolvable:$true] %s52
      %s54 = sshll.u32 %s2, 4
      %s55 = int_to_ptr.hbm [resolvable:$true] %s54
      %57 = dma.vmem_to_hbm [thread:$0]  %s53, 128, %s55, [#allocation3]
    $region13: #{tpu_custom_call.1} parent=1 // pred_fallthru
      _
    // Predicated region
    $region14: #{tpu_custom_call.1} parent=1 // pred_check
      _
    $region15: #{tpu_custom_call.1} parent=1 // pred_check_branch
      %59 = sbr.rel (0) target = $region17
    $region16: #{tpu_custom_call.1} parent=1 // pred_region
      %61 = dma.done [#allocation3], 128
    $region17: #{tpu_custom_call.1} parent=1 // pred_fallthru
      _
    %62 = vsyncpa [#allocation3], 1

</llo_original>
